<compile_context>
chip_gen: v6e
topology: v6e:2x2x1
jax: 0.10.0
libtpu: 0.0.40
codegen_flags: <defaults>
</compile_context>

<pallas_src>
import functools
import math

import jax
import jax.numpy as jnp
import numpy as np
from jax import lax
from jax.experimental import pallas as pl
from jax.experimental.pallas import tpu as pltpu


_K_RESIDENT_MAX = 2048          # keep the whole K dim resident below this
_VMEM_LIMIT_CACHE = [None]


def _vmem_limit():
    """Per-generation scoped-VMEM budget: ~3/4 of physical, capped at 100 MiB.

    v5e/v6e (128 MiB) -> ~96 MiB, v7x (64 MiB) -> 48 MiB.  Falls back to a
    safe 48 MiB if the hardware query is unavailable.
    """
    if _VMEM_LIMIT_CACHE[0] is None:
        limit = 48 * 1024 * 1024
        try:
            cap = getattr(pltpu.get_tpu_info(), "vmem_capacity_bytes", None)
            if cap:
                limit = min((int(cap) * 3) // 4, 100 * 1024 * 1024)
        except Exception:
            pass
        _VMEM_LIMIT_CACHE[0] = limit
    return _VMEM_LIMIT_CACHE[0]


def _tile(dim, target, align):
    """Largest tile <= target that divides `dim` and is a multiple of `align`.

    Falls back to the full dimension (always a legal BlockSpec block) when the
    dim is small or no aligned divisor exists — never returns an oversized or
    unaligned partial tile.
    """
    if dim <= target:
        return dim
    t = (target // align) * align
    while t >= align:
        if dim % t == 0:
            return t
        t -= align
    return dim


# ----------------------------------------------------------------------------
# Tiled linear kernels (bias / ReLU / residual / LayerNorm fused in epilogue)
# ----------------------------------------------------------------------------
def _linear2d_kernel(x_ref, w_ref, *rest, has_bias, has_residual, activation,
                     ln_eps):
    """K-resident path: single bf16 MXU matmul per (i, j) tile, f32 accum."""
    idx = 0
    b_ref = r_ref = g_ref = bt_ref = None
    if has_bias:
        b_ref = rest[idx]; idx += 1
    if has_residual:
        r_ref = rest[idx]; idx += 1
    if ln_eps is not None:
        g_ref, bt_ref = rest[idx], rest[idx + 1]; idx += 2
    o_ref = rest[idx]; idx += 1
    ln_ref = rest[idx] if ln_eps is not None else None

    y = jnp.dot(x_ref[...], w_ref[...], preferred_element_type=jnp.float32)
    if has_bias:
        y = y + b_ref[...].astype(jnp.float32)
    if activation == "relu":
        y = jnp.maximum(y, 0.0)
    if has_residual:
        y = y + r_ref[...].astype(jnp.float32)
    o_ref[...] = y.astype(o_ref.dtype)
    if ln_eps is not None:
        # Fused LayerNorm over the full row (tn == N): removes a whole
        # HBM read+write of the residual stream per sub-layer.
        mu = jnp.mean(y, axis=-1, keepdims=True)
        yc = y - mu
        var = jnp.mean(yc * yc, axis=-1, keepdims=True)
        ln = (yc * lax.rsqrt(var + ln_eps) * g_ref[...].astype(jnp.float32)
              + bt_ref[...].astype(jnp.float32))
        ln_ref[...] = ln.astype(ln_ref.dtype)


def _linear3d_kernel(x_ref, w_ref, *rest, has_bias, has_residual, activation):
    """Streamed-K path (K > _K_RESIDENT_MAX): f32 VMEM accumulator."""
    idx = 0
    b_ref = r_ref = None
    if has_bias:
        b_ref = rest[idx]; idx += 1
    if has_residual:
        r_ref = rest[idx]; idx += 1
    o_ref, acc_ref = rest[idx], rest[idx + 1]

    @pl.when(pl.program_id(2) == 0)
    def _init():
        acc_ref[...] = jnp.zeros_like(acc_ref)

    acc_ref[...] += jnp.dot(x_ref[...], w_ref[...],
                            preferred_element_type=jnp.float32)

    @pl.when(pl.program_id(2) == pl.num_programs(2) - 1)
    def _finalize():
        y = acc_ref[...]
        if has_bias:
            y = y + b_ref[...].astype(jnp.float32)
        if activation == "relu":
            y = jnp.maximum(y, 0.0)
        if has_residual:
            y = y + r_ref[...].astype(jnp.float32)
        o_ref[...] = y.astype(o_ref.dtype)


def pallas_linear(x2d, w_t, bias=None, residual=None, activation=None,
                  ln_params=None, out_dtype=None, ln_out_dtype=None,
                  tm=512, tn=512, tk=1024):
    """y = activation(x2d @ w_t + bias) [+ residual]; optionally also LN(y).

    x2d: [M, K] (usually bf16), w_t: [K, N] (torch [N, K] pre-transposed,
    usually bf16), bias: [N] or None, residual: [M, N] or None,
    ln_params: (gamma, beta, eps) -> returns (y, LayerNorm(y)).
    """
    M, K = x2d.shape
    K2, N = w_t.shape
    assert K == K2
    out_dtype = out_dtype if out_dtype is not None else x2d.dtype
    ln_out_dtype = ln_out_dtype if ln_out_dtype is not None else out_dtype
    has_bias = bias is not None
    has_res = residual is not None

    k_resident = K <= max(_K_RESIDENT_MAX, tk)
    # LN fusion needs the whole row (tn == N) in one tile; keep it to the
    # K-resident path and modest N so the tiles stay inside scoped VMEM.
    fuse_ln = (ln_params is not None) and k_resident and (N <= 4096)
    if fuse_ln and N >= 2048:
        tm = min(tm, 256)

    tm_ = _tile(M, tm, 16)
    tn_ = N if fuse_ln else _tile(N, tn, 128)

    operands = [x2d, w_t]
    bytes_accessed = (x2d.size * x2d.dtype.itemsize
                      + w_t.size * w_t.dtype.itemsize
                      + M * N * np.dtype(out_dtype).itemsize)
    if has_res:
        bytes_accessed += residual.size * residual.dtype.itemsize
    cost = pl.CostEstimate(flops=2 * M * N * K, transcendentals=0,
                           bytes_accessed=int(bytes_accessed))

    if k_resident:
        grid = (M // tm_, N // tn_)
        in_specs = [pl.BlockSpec((tm_, K), lambda i, j: (i, 0)),
                    pl.BlockSpec((K, tn_), lambda i, j: (0, j))]
        if has_bias:
            in_specs.append(pl.BlockSpec((1, tn_), lambda i, j: (0, j)))
            operands.append(bias.reshape(1, N).astype(jnp.float32))
        if has_res:
            in_specs.append(pl.BlockSpec((tm_, tn_), lambda i, j: (i, j)))
            operands.append(residual)
        if fuse_ln:
            gamma, beta, _eps = ln_params
            in_specs.append(pl.BlockSpec((1, N), lambda i, j: (0, 0)))
            in_specs.append(pl.BlockSpec((1, N), lambda i, j: (0, 0)))
            operands.append(gamma.reshape(1, N).astype(jnp.float32))
            operands.append(beta.reshape(1, N).astype(jnp.float32))
            out_shape = (jax.ShapeDtypeStruct((M, N), out_dtype),
                         jax.ShapeDtypeStruct((M, N), ln_out_dtype))
            out_specs = (pl.BlockSpec((tm_, tn_), lambda i, j: (i, j)),
                         pl.BlockSpec((tm_, tn_), lambda i, j: (i, j)))
        else:
            out_shape = jax.ShapeDtypeStruct((M, N), out_dtype)
            out_specs = pl.BlockSpec((tm_, tn_), lambda i, j: (i, j))

        kernel = functools.partial(
            _linear2d_kernel, has_bias=has_bias, has_residual=has_res,
            activation=activation,
            ln_eps=(ln_params[2] if fuse_ln else None))
        result = pl.pallas_call(
            kernel, out_shape=out_shape, grid=grid,
            in_specs=in_specs, out_specs=out_specs,
            compiler_params=pltpu.CompilerParams(
                dimension_semantics=("parallel", "parallel"),
                vmem_limit_bytes=_vmem_limit()),
            cost_estimate=cost,
        )(*operands)
    else:
        tk_ = _tile(K, tk, 128)
        grid = (M // tm_, N // tn_, K // tk_)
        in_specs = [pl.BlockSpec((tm_, tk_), lambda i, j, k: (i, k)),
                    pl.BlockSpec((tk_, tn_), lambda i, j, k: (k, j))]
        if has_bias:
            in_specs.append(pl.BlockSpec((1, tn_), lambda i, j, k: (0, j)))
            operands.append(bias.reshape(1, N).astype(jnp.float32))
        if has_res:
            in_specs.append(pl.BlockSpec((tm_, tn_), lambda i, j, k: (i, j)))
            operands.append(residual)
        kernel = functools.partial(
            _linear3d_kernel, has_bias=has_bias, has_residual=has_res,
            activation=activation)
        result = pl.pallas_call(
            kernel,
            out_shape=jax.ShapeDtypeStruct((M, N), out_dtype),
            grid=grid, in_specs=in_specs,
            out_specs=pl.BlockSpec((tm_, tn_), lambda i, j, k: (i, j)),
            scratch_shapes=[pltpu.VMEM((tm_, tn_), jnp.float32)],
            compiler_params=pltpu.CompilerParams(
                dimension_semantics=("parallel", "parallel", "arbitrary"),
                vmem_limit_bytes=_vmem_limit()),
            cost_estimate=cost,
        )(*operands)

    if ln_params is not None and not fuse_ln:
        gamma, beta, eps = ln_params
        ln_out = pallas_layernorm(result, gamma, beta, eps=eps,
                                  out_dtype=ln_out_dtype)
        return result, ln_out
    return result


# ----------------------------------------------------------------------------
# Standalone LayerNorm kernel (used for the first LN / fallback)
# ----------------------------------------------------------------------------
def _layernorm_kernel(x_ref, g_ref, b_ref, o_ref, *, eps):
    x = x_ref[...].astype(jnp.float32)
    mu = jnp.mean(x, axis=-1, keepdims=True)
    xc = x - mu
    var = jnp.mean(xc * xc, axis=-1, keepdims=True)
    y = (xc * lax.rsqrt(var + eps) * g_ref[...].astype(jnp.float32)
         + b_ref[...].astype(jnp.float32))
    o_ref[...] = y.astype(o_ref.dtype)


def pallas_layernorm(x2d, gamma, beta, eps=1e-6, out_dtype=None, tm=1024):
    M, D = x2d.shape
    out_dtype = out_dtype if out_dtype is not None else x2d.dtype
    tm_ = _tile(M, tm, 16)
    return pl.pallas_call(
        functools.partial(_layernorm_kernel, eps=eps),
        out_shape=jax.ShapeDtypeStruct((M, D), out_dtype),
        grid=(M // tm_,),
        in_specs=[
            pl.BlockSpec((tm_, D), lambda i: (i, 0)),
            pl.BlockSpec((1, D), lambda i: (0, 0)),
            pl.BlockSpec((1, D), lambda i: (0, 0)),
        ],
        out_specs=pl.BlockSpec((tm_, D), lambda i: (i, 0)),
        compiler_params=pltpu.CompilerParams(
            dimension_semantics=("parallel",),
            vmem_limit_bytes=_vmem_limit()),
    )(x2d, gamma.reshape(1, D).astype(jnp.float32),
      beta.reshape(1, D).astype(jnp.float32))


# ----------------------------------------------------------------------------
# Flash-style multi-head attention kernel
# ----------------------------------------------------------------------------
def _mha_kernel(skip_ref, q_ref, *rest, fused_kv, num_heads, head_dim,
                q_off, k_off, v_off):
    if fused_kv:
        kv_ref, mask_ref, o_ref, m_sc, l_sc, acc_sc = rest
        k_ref = v_ref = kv_ref
    else:
        k_ref, v_ref, mask_ref, o_ref, m_sc, l_sc, acc_sc = rest

    H, d = num_heads, head_dim
    b = pl.program_id(0)
    qi = pl.program_id(1)
    ki = pl.program_id(2)
    nq = pl.num_programs(1)
    nk = pl.num_programs(2)

    @pl.when(ki == 0)
    def _init():
        m_sc[...] = jnp.full_like(m_sc, -1e30)
        l_sc[...] = jnp.zeros_like(l_sc)
        acc_sc[...] = jnp.zeros_like(acc_sc)

    block_skipped = skip_ref[(b * nq + qi) * nk + ki]

    @pl.when(block_skipped == 0)
    def _compute():
        # Additive mask bias, computed ONCE per (qi, ki) block (hoisted out of
        # the head loop).  nonzero == masked.
        bias = jnp.where(mask_ref[...].astype(jnp.float32) != 0.0,
                         jnp.float32(-1e9), jnp.float32(0.0))
        q_all = q_ref[...]            # bf16 — MXU input (scale folded into Wq)
        k_all = k_ref[...]
        v_all = v_ref[...]
        # TODO(synk): when head_dim < 128 these per-head slices are not
        # lane-aligned; moving the head axis into the grid (with head padding)
        # would avoid the relayouts.
        for h in range(H):
            q_h = q_all[:, q_off + h * d: q_off + (h + 1) * d]
            k_h = k_all[:, k_off + h * d: k_off + (h + 1) * d]
            v_h = v_all[:, v_off + h * d: v_off + (h + 1) * d]

            # q @ k^T via dot_general contracting the last dims (no transpose);
            # bf16 MXU inputs, f32 accumulation.
            s = lax.dot_general(q_h, k_h, (((1,), (1,)), ((), ())),
                                preferred_element_type=jnp.float32)
            s = s + bias                                    # masked_fill_(-1e9)

            m_prev = m_sc[h]
            m_new = jnp.maximum(m_prev, jnp.max(s, axis=-1, keepdims=True))
            alpha = jnp.exp(m_prev - m_new)                 # f32 softmax (v5e-safe)
            p = jnp.exp(s - m_new)
            l_sc[h] = alpha * l_sc[h] + jnp.sum(p, axis=-1, keepdims=True)
            acc_sc[h] = alpha * acc_sc[h] + jnp.dot(
                p.astype(v_h.dtype), v_h, preferred_element_type=jnp.float32)
            m_sc[h] = m_new

    @pl.when(ki == nk - 1)
    def _finalize():
        # TODO(synk): att_dropout is identity here (eval mode).
        # Single lane-dense store of all heads (avoids d-wide masked partial
        # stores); approx reciprocal goes to the EUP slot.
        parts = []
        for h in range(H):
            inv_l = pl.reciprocal(jnp.maximum(l_sc[h], 1e-30), approx=True)
            parts.append(acc_sc[h] * inv_l)
        o_ref[...] = jnp.concatenate(parts, axis=-1).astype(o_ref.dtype)


def pallas_mha(q_src, kv_src, mask_bool, *, num_heads, head_dim,
               q_col, k_col, v_col, out_dtype, skip_blocks=False,
               block_q=128, block_k=256):
    """softmax((q @ k^T) masked) @ v per head; output merged as [B, Sq, H*d].

    q_src/kv_src may alias the same fused QKV projection; q_col/k_col/v_col
    give the column offset of each operand's H*d group.  mask_bool:
    [B, Sq, Sk], True == masked.  skip_blocks: skip fully-masked (q, k) tile
    blocks (safe for causal masks — every query row keeps key 0 unmasked).
    """
    B, Sq, Fq = q_src.shape
    Bk, Sk, Fkv = kv_src.shape
    assert B == Bk
    H, d = num_heads, head_dim
    Hd = H * d

    tq = _tile(Sq, block_q, 32)
    tk = _tile(Sk, block_k, 128)
    nq, nk = Sq // tq, Sk // tk
    grid = (B, nq, nk)

    mask_i8 = mask_bool.astype(jnp.int8)     # 4x less HBM/VMEM traffic than f32
    if skip_blocks and nk > 1:
        mblk = mask_bool.reshape(B, nq, tq, nk, tk)
        skip = jnp.all(mblk, axis=(2, 4)).astype(jnp.int32).reshape(-1)
    else:
        skip = jnp.zeros((B * nq * nk,), jnp.int32)

    mask_spec = pl.BlockSpec((None, tq, tk), lambda b, qi, ki, s: (b, qi, ki))
    aligned = (Hd % 128 == 0 and q_col % Hd == 0
               and k_col % Hd == 0 and v_col % Hd == 0)
    if aligned:
        qb, kb, vb = q_col // Hd, k_col // Hd, v_col // Hd
        in_specs = [
            pl.BlockSpec((None, tq, Hd), lambda b, qi, ki, s: (b, qi, qb)),
            pl.BlockSpec((None, tk, Hd), lambda b, qi, ki, s: (b, ki, kb)),
            pl.BlockSpec((None, tk, Hd), lambda b, qi, ki, s: (b, ki, vb)),
            mask_spec,
        ]
        operands = [q_src, kv_src, kv_src, mask_i8]
        fused_kv = False
        q_off = k_off = v_off = 0
    else:
        # Unaligned fallback (H*d not a multiple of 128): fetch the fused
        # feature block ONCE for K and V (de-duped) and slice in-kernel.
        in_specs = [
            pl.BlockSpec((None, tq, Fq), lambda b, qi, ki, s: (b, qi, 0)),
            pl.BlockSpec((None, tk, Fkv), lambda b, qi, ki, s: (b, ki, 0)),
            mask_spec,
        ]
        operands = [q_src, kv_src, mask_i8]
        fused_kv = True
        q_off, k_off, v_off = q_col, k_col, v_col

    kernel = functools.partial(
        _mha_kernel, fused_kv=fused_kv, num_heads=H, head_dim=d,
        q_off=q_off, k_off=k_off, v_off=v_off)

    cost = pl.CostEstimate(
        flops=4 * B * H * Sq * Sk * d,
        transcendentals=B * H * Sq * Sk,
        bytes_accessed=int(2 * B * (2 * Sq * Hd + 2 * Sk * Hd) + B * Sq * Sk))

    return pl.pallas_call(
        kernel,
        out_shape=jax.ShapeDtypeStruct((B, Sq, Hd), out_dtype),
        grid_spec=pltpu.PrefetchScalarGridSpec(
            num_scalar_prefetch=1,
            grid=grid,
            in_specs=in_specs,
            out_specs=pl.BlockSpec((None, tq, Hd),
                                   lambda b, qi, ki, s: (b, qi, 0)),
            scratch_shapes=[
                pltpu.VMEM((H, tq, 1), jnp.float32),   # running max m
                pltpu.VMEM((H, tq, 1), jnp.float32),   # running denom l
                pltpu.VMEM((H, tq, d), jnp.float32),   # running accumulator
            ]),
        compiler_params=pltpu.CompilerParams(
            dimension_semantics=("parallel", "parallel", "arbitrary"),
            vmem_limit_bytes=_vmem_limit()),
        cost_estimate=cost,
    )(skip, *operands)


# ----------------------------------------------------------------------------
# Parameter containers / module wrappers
# ----------------------------------------------------------------------------
def _xavier_uniform(key, out_f, in_f):
    bound = math.sqrt(6.0 / (in_f + out_f))
    return jax.random.uniform(key, (out_f, in_f), jnp.float32, -bound, bound)


class MultiHeadAttentionPallas:
    """att_type == 'global' only.  Dropout is identity (eval mode)."""

    def __init__(self, hidden_size, dropout_rate, head_size, att_type,
                 block_length, key, compute_dtype=jnp.bfloat16):
        # TODO(synk): att_type == 'local_1d' (blockwise local attention), the
        # incremental-decode cache and attn_visual are not lowered to Pallas.
        assert att_type == "global"
        del dropout_rate, block_length
        self.head_size = head_size
        self.att_size = hidden_size // head_size
        self.scale = self.att_size ** (-0.5)
        self.hidden_size = hidden_size
        self.compute_dtype = compute_dtype
        Hd = head_size * self.att_size

        kq, kk, kv, ko = jax.random.split(key, 4)
        # Torch-layout [out, in] f32 weights (kept for the pure-JAX reference).
        self.wq = _xavier_uniform(kq, Hd, hidden_size)
        self.wk = _xavier_uniform(kk, Hd, hidden_size)
        self.wv = _xavier_uniform(kv, Hd, hidden_size)
        self.wo = _xavier_uniform(ko, hidden_size, Hd)

        # Pallas path: pre-transposed [in, out] bf16; 1/sqrt(d) folded into Wq;
        # QKV (and KV for cross-attention) fused so activations are read once.
        cd = compute_dtype
        self.w_qkv_t = jnp.concatenate(
            [(self.wq * self.scale).T, self.wk.T, self.wv.T], axis=1).astype(cd)
        self.w_q_t = (self.wq * self.scale).T.astype(cd)
        self.w_kv_t = jnp.concatenate([self.wk.T, self.wv.T], axis=1).astype(cd)
        self.wo_t = self.wo.T.astype(cd)

    def __call__(self, q_in, k_in, v_in, mask_bool, residual2d, ln_next=None,
                 skip_blocks=False):
        B, Sq, hid = q_in.shape
        H, d = self.head_size, self.att_size
        Hd = H * d
        cd = self.compute_dtype

        if (q_in is k_in) and (k_in is v_in):
            # Self-attention: single fused QKV projection.
            qkv = pallas_linear(q_in.reshape(-1, hid), self.w_qkv_t,
                                out_dtype=cd).reshape(B, Sq, 3 * Hd)
            q_src, kv_src = qkv, qkv
            q_col, k_col, v_col = 0, Hd, 2 * Hd
        else:
            # Cross-attention: Q from the decoder stream, fused K/V from encoder.
            assert k_in is v_in
            Sk = k_in.shape[1]
            q_src = pallas_linear(q_in.reshape(-1, hid), self.w_q_t,
                                  out_dtype=cd).reshape(B, Sq, Hd)
            kv_src = pallas_linear(k_in.reshape(-1, hid), self.w_kv_t,
                                   out_dtype=cd).reshape(B, Sk, 2 * Hd)
            q_col, k_col, v_col = 0, 0, Hd

        attn = pallas_mha(q_src, kv_src, mask_bool,
                          num_heads=H, head_dim=d,
                          q_col=q_col, k_col=k_col, v_col=v_col,
                          out_dtype=cd, skip_blocks=skip_blocks)   # [B, Sq, H*d]

        # Output projection with residual add (and the NEXT LayerNorm) fused
        # into the epilogue.  Residual stream stays f32.
        return pallas_linear(attn.reshape(-1, Hd), self.wo_t,
                             residual=residual2d, ln_params=ln_next,
                             out_dtype=jnp.float32, ln_out_dtype=cd)


class DecoderLayerPallas:
    def __init__(self, hidden_size, filter_size, dropout_rate, head_size,
                 att_type, block_length, key, compute_dtype=jnp.bfloat16):
        keys = jax.random.split(key, 4)
        self.hidden_size = hidden_size
        self.compute_dtype = compute_dtype
        cd = compute_dtype

        # LayerNorm params (weight=1, bias=0, eps=1e-6 per the module spec).
        self.ln1_g = jnp.ones((hidden_size,), jnp.float32)
        self.ln1_b = jnp.zeros((hidden_size,), jnp.float32)
        self.ln2_g = jnp.ones((hidden_size,), jnp.float32)
        self.ln2_b = jnp.zeros((hidden_size,), jnp.float32)
        self.ln3_g = jnp.ones((hidden_size,), jnp.float32)
        self.ln3_b = jnp.zeros((hidden_size,), jnp.float32)

        self.self_attention = MultiHeadAttentionPallas(
            hidden_size, dropout_rate, head_size, att_type, block_length,
            keys[0], cd)
        self.enc_dec_attention = MultiHeadAttentionPallas(
            hidden_size, dropout_rate, 1, "global", 0, keys[1], cd)

        # FFN (biases zero-initialized, matching initialize_weight).
        self.ffn_w1 = _xavier_uniform(keys[2], filter_size, hidden_size)
        self.ffn_b1 = jnp.zeros((filter_size,), jnp.float32)
        self.ffn_w2 = _xavier_uniform(keys[3], hidden_size, filter_size)
        self.ffn_b2 = jnp.zeros((hidden_size,), jnp.float32)
        self.ffn_w1_t = self.ffn_w1.T.astype(cd)
        self.ffn_w2_t = self.ffn_w2.T.astype(cd)

    def __call__(self, x, enc_output, self_mask, i_mask, cache=None,
                 attn_visual=False):
        # TODO(synk): cache and attn_visual are not supported in the Pallas path.
        del cache, attn_visual
        B, S, hid = x.shape
        cd = self.compute_dtype
        eps = 1e-6

        x2 = x.reshape(-1, hid).astype(jnp.float32)        # f32 residual stream
        y = pallas_layernorm(x2, self.ln1_g, self.ln1_b, eps=eps, out_dtype=cd)
        y3 = y.reshape(B, S, hid)

        # --- self-attention sub-layer; fully-masked causal key blocks skipped,
        # the following LayerNorm is fused into its output projection.
        ln_after_self = ((self.ln2_g, self.ln2_b, eps) if enc_output is not None
                         else (self.ln3_g, self.ln3_b, eps))
        x2, y = self.self_attention(y3, y3, y3, self_mask, residual2d=x2,
                                    ln_next=ln_after_self, skip_blocks=True)

        # --- encoder-decoder attention sub-layer ---
        if enc_output is not None:
            enc_c = enc_output.astype(cd)
            y3 = y.reshape(B, S, hid)
            x2, y = self.enc_dec_attention(y3, enc_c, enc_c, i_mask,
                                           residual2d=x2,
                                           ln_next=(self.ln3_g, self.ln3_b, eps),
                                           skip_blocks=False)

        # --- feed-forward sub-layer (ReLU fused in layer1, residual in layer2)
        h = pallas_linear(y, self.ffn_w1_t, bias=self.ffn_b1,
                          activation="relu", out_dtype=cd)
        out = pallas_linear(h, self.ffn_w2_t, bias=self.ffn_b2,
                            residual=x2, out_dtype=jnp.float32)
        return out.reshape(B, S, hid), None, None


# ----------------------------------------------------------------------------
# Pure-JAX f32 reference (mirrors the PyTorch forward) for the correctness check
# ----------------------------------------------------------------------------
def _reference_layernorm(x, g, b, eps=1e-6):
    mu = jnp.mean(x, axis=-1, keepdims=True)
    var = jnp.mean((x - mu) ** 2, axis=-1, keepdims=True)
    return (x - mu) / jnp.sqrt(var + eps) * g + b


def _reference_mha(mod, q, k, v, mask):
    B, Sq, hid = q.shape
    Sk = k.shape[1]
    H, d = mod.head_size, mod.att_size
    qp = (q.reshape(-1, hid) @ mod.wq.T).reshape(B, Sq, H, d)
    kp = (k.reshape(-1, hid) @ mod.wk.T).reshape(B, Sk, H, d)
    vp = (v.reshape(-1, hid) @ mod.wv.T).reshape(B, Sk, H, d)
    qh = jnp.transpose(qp, (0, 2, 1, 3)) * mod.scale
    kh = jnp.transpose(kp, (0, 2, 1, 3))
    vh = jnp.transpose(vp, (0, 2, 1, 3))
    s = jnp.einsum("bhqd,bhkd->bhqk", qh, kh)
    s = jnp.where(mask[:, None, :, :], -1.0e9, s)
    p = jax.nn.softmax(s, axis=-1)
    o = jnp.einsum("bhqk,bhkd->bhqd", p, vh)
    o = jnp.transpose(o, (0, 2, 1, 3)).reshape(B, Sq, H * d)
    return (o.reshape(-1, H * d) @ mod.wo.T).reshape(B, Sq, hid)


def reference_decoder_layer(layer, x, enc_output, self_mask, i_mask):
    hid = layer.hidden_size
    y = _reference_layernorm(x, layer.ln1_g, layer.ln1_b)
    x = x + _reference_mha(layer.self_attention, y, y, y, self_mask)
    if enc_output is not None:
        y = _reference_layernorm(x, layer.ln2_g, layer.ln2_b)
        x = x + _reference_mha(layer.enc_dec_attention, y, enc_output,
                               enc_output, i_mask)
    y = _reference_layernorm(x, layer.ln3_g, layer.ln3_b)
    h = jnp.maximum(y.reshape(-1, hid) @ layer.ffn_w1.T + layer.ffn_b1, 0.0)
    y = (h @ layer.ffn_w2.T + layer.ffn_b2).reshape(x.shape)
    return x + y


# ----------------------------------------------------------------------------
if __name__ == "__main__":
    key = jax.random.PRNGKey(0)
    kparam, kx, kenc = jax.random.split(key, 3)

    B, S, S_enc = 2, 8, 16
    hidden, filter_size, head_size = 32, 64, 4

    layer = DecoderLayerPallas(hidden_size=hidden, filter_size=filter_size,
                               dropout_rate=0.0, head_size=head_size,
                               att_type="global", block_length=4, key=kparam)

    x = jax.random.normal(kx, (B, S, hidden), jnp.float32)
    enc_output = jax.random.normal(kenc, (B, S_enc, hidden), jnp.float32)

    # Self-attention mask: causal (future positions masked -> True).
    pos = jnp.arange(S)
    self_mask = jnp.broadcast_to(pos[None, :, None] < pos[None, None, :],
                                 (B, S, S))
    # Enc-dec mask: padding — batch 1's last 4 encoder positions are masked.
    enc_pos = jnp.arange(S_enc)
    pad = jnp.stack([jnp.zeros((S_enc,), jnp.bool_), enc_pos >= (S_enc - 4)])
    i_mask = jnp.broadcast_to(pad[:, None, :], (B, S, S_enc))

    out, _, _ = layer(x, enc_output, self_mask, i_mask)
    out = jax.block_until_ready(out)

    ref = reference_decoder_layer(layer, x, enc_output, self_mask, i_mask)
    assert out.shape == (B, S, hidden)
    # bf16 MXU path vs. f32 reference: loose-ish tolerance (catches wiring
    # errors which are O(1), tolerates bf16 rounding which is O(1e-2)).
    np.testing.assert_allclose(np.asarray(out, dtype=np.float32),
                               np.asarray(ref), rtol=5e-2, atol=5e-2)
    print("KERNEL_OK")
</pallas_src>

<mosaic_0001>
module attributes {stable_mosaic.version = 11 : i64} {
  func.func @_layernorm_kernel(%arg0: i32, %arg1: memref<16x32xf32, #tpu.memory_space<vmem>>, %arg2: memref<1x32xf32, #tpu.memory_space<vmem>>, %arg3: memref<1x32xf32, #tpu.memory_space<vmem>>, %arg4: memref<16x32xbf16, #tpu.memory_space<vmem>>) attributes {dimension_semantics = [#tpu.dimension_semantics<parallel>], iteration_bounds = array<i64: 1>, scalar_prefetch = 0 : i64, scratch_operands = 0 : i64, tpu.core_type = #tpu.core_type<tc>, window_params = [{transform_indices = @transform_0, window_bounds = array<i64: 16, 32>}, {pipeline_mode = #tpu.pipeline_mode<synchronous>, transform_indices = @transform_1, window_bounds = array<i64: 1, 32>}, {pipeline_mode = #tpu.pipeline_mode<synchronous>, transform_indices = @transform_2, window_bounds = array<i64: 1, 32>}, {transform_indices = @transform_3, window_bounds = array<i64: 16, 32>}]} {
    %c0 = arith.constant 0 : index
    %c0_0 = arith.constant 0 : index
    %0 = vector.load %arg1[%c0, %c0_0] : memref<16x32xf32, #tpu.memory_space<vmem>>, vector<16x32xf32>
    %cst = arith.constant dense<0.000000e+00> : vector<16xf32>
    %1 = vector.multi_reduction <add>, %0, %cst [1] : vector<16x32xf32> to vector<16xf32>
    %2 = vector.shape_cast %1 : vector<16xf32> to vector<16x1xf32>
    %cst_1 = arith.constant 3.200000e+01 : f32
    %3 = vector.broadcast %cst_1 : f32 to vector<16x1xf32>
    %4 = arith.divf %2, %3 : vector<16x1xf32>
    %5 = vector.broadcast %4 : vector<16x1xf32> to vector<16x32xf32>
    %6 = arith.subf %0, %5 : vector<16x32xf32>
    %7 = arith.mulf %6, %6 : vector<16x32xf32>
    %cst_2 = arith.constant dense<0.000000e+00> : vector<16xf32>
    %8 = vector.multi_reduction <add>, %7, %cst_2 [1] : vector<16x32xf32> to vector<16xf32>
    %9 = vector.shape_cast %8 : vector<16xf32> to vector<16x1xf32>
    %cst_3 = arith.constant 3.200000e+01 : f32
    %10 = vector.broadcast %cst_3 : f32 to vector<16x1xf32>
    %11 = arith.divf %9, %10 : vector<16x1xf32>
    %cst_4 = arith.constant 9.99999997E-7 : f32
    %12 = vector.broadcast %cst_4 : f32 to vector<16x1xf32>
    %13 = arith.addf %11, %12 : vector<16x1xf32>
    %14 = math.rsqrt %13 : vector<16x1xf32>
    %15 = vector.broadcast %14 : vector<16x1xf32> to vector<16x32xf32>
    %16 = arith.mulf %6, %15 : vector<16x32xf32>
    %c0_5 = arith.constant 0 : index
    %c0_6 = arith.constant 0 : index
    %17 = vector.load %arg2[%c0_5, %c0_6] : memref<1x32xf32, #tpu.memory_space<vmem>>, vector<1x32xf32>
    %18 = vector.broadcast %17 : vector<1x32xf32> to vector<16x32xf32>
    %19 = arith.mulf %16, %18 : vector<16x32xf32>
    %c0_7 = arith.constant 0 : index
    %c0_8 = arith.constant 0 : index
    %20 = vector.load %arg3[%c0_7, %c0_8] : memref<1x32xf32, #tpu.memory_space<vmem>>, vector<1x32xf32>
    %21 = vector.broadcast %20 : vector<1x32xf32> to vector<16x32xf32>
    %22 = arith.addf %19, %21 : vector<16x32xf32>
    %23 = arith.truncf %22 : vector<16x32xf32> to vector<16x32xbf16>
    %c0_9 = arith.constant 0 : index
    %c0_10 = arith.constant 0 : index
    %24 = vector.load %arg4[%c0_9, %c0_10] : memref<16x32xbf16, #tpu.memory_space<vmem>>, vector<16x32xbf16>
    tpu.vector_store %arg4[%c0_9, %c0_10], %23 {strides = array<i32>} : memref<16x32xbf16, #tpu.memory_space<vmem>>, vector<16x32xbf16>,
    return
  }
  func.func @transform_0(%arg0: i32) -> (i32, i32) {
    %c0_i32 = arith.constant 0 : i32
    %c0_i32_0 = arith.constant 0 : i32
    return %arg0, %c0_i32 : i32, i32
  }
  func.func @transform_1(%arg0: i32) -> (i32, i32) {
    %c0_i32 = arith.constant 0 : i32
    %c0_i32_0 = arith.constant 0 : i32
    %c0_i32_1 = arith.constant 0 : i32
    return %c0_i32, %c0_i32_0 : i32, i32
  }
  func.func @transform_2(%arg0: i32) -> (i32, i32) {
    %c0_i32 = arith.constant 0 : i32
    %c0_i32_0 = arith.constant 0 : i32
    %c0_i32_1 = arith.constant 0 : i32
    return %c0_i32, %c0_i32_0 : i32, i32
  }
  func.func @transform_3(%arg0: i32) -> (i32, i32) {
    %c0_i32 = arith.constant 0 : i32
    %c0_i32_0 = arith.constant 0 : i32
    return %arg0, %c0_i32 : i32, i32
  }
}

</mosaic_0001>

<llo_original>
// kernel: tpu_custom_call.1
$region0: #{tpu_custom_call.1}
  #allocation0 [shape = 'u32[]', space=smem, size = 0x4, offset = 0x4, fixed_abs, tag = 'smem constant byte address 0x4 - core index']
  #allocation1 [shape = 'u32[144,128]{1,0:T(1,128)}', space=vmem, size = 0x12000, scoped, tag = 'internal scratch']
  %s0 = inlined_call_operand.hbm [shape: f32[16,32], index: 0, kind: input, shape index: {}]
  %s1 = inlined_call_operand.vmem [shape: f32[1,32], index: 1, kind: input, shape index: {}]
  %s2 = inlined_call_operand.vmem [shape: f32[1,32], index: 2, kind: input, shape index: {}]
  %s3 = inlined_call_operand.hbm [shape: bf16[16,32], index: 3, kind: output, shape index: {}]
  %s4 = sld [smem:[#allocation0]]
  $region26: #{tpu_custom_call.1} parent=0
    _
  %s6 = ssub.s32 1, %s4
  %s7 = scalar_select 0, %s6, %s4
  $region1: #{tpu_custom_call.1} parent=0
    #allocation2 [shape = 'u8[8192]{0}', space=vmem, size = 0x2000, scoped, tag = 'input window, operand 0, single buffered']
    #allocation3 [shape = 's32[1]{0}', space=sflag, size = 0x4, scoped, tag = 'scoped memory for tpu_custom_call.1']
    #allocation4 [shape = 's32[1]{0}', space=sflag, size = 0x4, scoped, tag = 'scoped memory for tpu_custom_call.1']
    #allocation5 [shape = 'u8[4096]{0}', space=vmem, size = 0x1000, scoped, tag = 'output window, operand 0, single buffered']
    %8 = vsyncpa [#allocation3], 0
    %9 = vsyncpa [#allocation4], 0
    // Predicated region
    $region2: #{tpu_custom_call.1} parent=1 // pred_check
      _
    $region3: #{tpu_custom_call.1} parent=1 // pred_check_branch
      %11 = sbr.rel (0) target = $region5
    $region4: #{tpu_custom_call.1} parent=1 // pred_region
      %s13 = ssub.s32 256, 256
      %14 = vsyncadd [#allocation3], %s13
      %s15 = sshll.u32 [#allocation2], 4
      %s16 = int_to_ptr.vmem [resolvable:$true] %s15
      %21 = dma.hbm_to_vmem [thread:$0]  %s0, 256, %s16, [#allocation3], 128, 128, 8
    $region5: #{tpu_custom_call.1} parent=1 // pred_fallthru
      _
    // Predicated region
    $region6: #{tpu_custom_call.1} parent=1 // pred_check
      _
    $region7: #{tpu_custom_call.1} parent=1 // pred_check_branch
      %23 = sbr.rel (0) target = $region9
    $region8: #{tpu_custom_call.1} parent=1 // pred_region
      _
    $region9: #{tpu_custom_call.1} parent=1 // pred_fallthru
      _
    // Predicated region
    $region10: #{tpu_custom_call.1} parent=1 // pred_check
      _
    $region11: #{tpu_custom_call.1} parent=1 // pred_check_branch
      %25 = sbr.rel (0) target = $region13
    $region12: #{tpu_custom_call.1} parent=1 // pred_region
      _
    $region13: #{tpu_custom_call.1} parent=1 // pred_fallthru
      _
    // Predicated region
    $region14: #{tpu_custom_call.1} parent=1 // pred_check
      _
    $region15: #{tpu_custom_call.1} parent=1 // pred_check_branch
      %27 = sbr.rel (0) target = $region17
    $region16: #{tpu_custom_call.1} parent=1 // pred_region
      %28 = dma.done [#allocation3], 256
    $region17: #{tpu_custom_call.1} parent=1 // pred_fallthru
      _
    %v29 = vld [vmem:[#allocation2] sm:$0xff]
    %v30 = vld [vmem:[#allocation2 + $0x8] sm:$0xff]
    %vm31 = vcmask 261120
    %v32 = vsel %vm31, %v29, 0.0
    %33 = vadd.xlane.f32.xlu0 %v32
    %v34 = vpop.xlane.xlu0 %33
    %v35 = vsel %vm31, %v30, 0.0
    %36 = vadd.xlane.f32.xlu0 %v35
    %v37 = vpop.xlane.xlu0 %36
    %v38 = vrcp.pop 32.0
    %v39 = vmul.f32 %v34, %v38
    %v40 = vmul.f32 %v37, %v38
    %v41 = vsub.f32 %v29, %v39
    %v42 = vsub.f32 %v30, %v40
    %v43 = vmul.f32 %v41, %v41
    %v44 = vmul.f32 %v42, %v42
    %v45 = vsel %vm31, %v43, 0.0
    %46 = vadd.xlane.f32.xlu0 %v45
    %v47 = vpop.xlane.xlu0 %46
    %v48 = vsel %vm31, %v44, 0.0
    %49 = vadd.xlane.f32.xlu0 %v48
    %v50 = vpop.xlane.xlu0 %49
    %v51 = vmul.f32 %v47, %v38
    %v52 = vmul.f32 %v50, %v38
    %v53 = vadd.f32 %v51, 1e-06
    %v54 = vadd.f32 %v52, 1e-06
    %v55 = vrsqrt.pop %v53
    %v56 = vrsqrt.pop %v54
    %v57 = vmul.f32 %v41, %v55
    %v58 = vmul.f32 %v42, %v56
    %v59 = vld [vmem:[%s1] sm:$0x1]
    %v61 = vlaneseq
    %v62 = vshrl.u32 %v61, 7
    %v63 = vsub.s32 0, %v62
    %v64 = vrot.slane %v59, %v63
    %v66 = vmul.f32 %v57, %v64
    %v67 = vmul.f32 %v58, %v64
    %v68 = vld [vmem:[%s2] sm:$0x1]
    %v70 = vlaneseq
    %v71 = vshrl.u32 %v70, 7
    %v72 = vsub.s32 0, %v71
    %v73 = vrot.slane %v68, %v72
    %v75 = vadd.f32 %v66, %v73
    %v76 = vadd.f32 %v67, %v73
    %v77 = vpack.c.bf16 %v76, %v75
    %v79 = vunpack.c.l.b16 %v77
    %v80 = vunpack.c.h.b16 %v77
    %v81 = vpack.c.b16 %v79, %v79
    %v82 = vpack.c.b16 %v80, %v80
    %vm85 = vcmask 257024
    %86 = vst.msk [vmem:[#allocation5] sm:$0xf] %vm85, %v81
    %87 = vst.msk [vmem:[#allocation5 + $0x4] sm:$0xf] %vm85, %v82
    // Predicated region
    $region18: #{tpu_custom_call.1} parent=1 // pred_check
      _
    $region19: #{tpu_custom_call.1} parent=1 // pred_check_branch
      %89 = sbr.rel (0) target = $region21
    $region20: #{tpu_custom_call.1} parent=1 // pred_region
      %s91 = ssub.s32 128, 128
      %92 = vsyncadd [#allocation4], %s91
      %s93 = sshll.u32 [#allocation5], 4
      %s94 = int_to_ptr.vmem [resolvable:$true] %s93
      %99 = dma.vmem_to_hbm [thread:$0]  %s94, 128, %s3, [#allocation4], 64, 64, 4
    $region21: #{tpu_custom_call.1} parent=1 // pred_fallthru
      _
    // Predicated region
    $region22: #{tpu_custom_call.1} parent=1 // pred_check
      _
    $region23: #{tpu_custom_call.1} parent=1 // pred_check_branch
      %101 = sbr.rel (0) target = $region25
    $region24: #{tpu_custom_call.1} parent=1 // pred_region
      %102 = dma.done [#allocation4], 128
    $region25: #{tpu_custom_call.1} parent=1 // pred_fallthru
      _
    %103 = vsyncpa [#allocation3], 1
    %104 = vsyncpa [#allocation4], 1

</llo_original>
